<compile_context>
chip_gen: v6e
topology: v6e:2x2x1
jax: 0.10.0
libtpu: 0.0.40
codegen_flags: <defaults>
</compile_context>

<pallas_src>
import jax
import jax.numpy as jnp
from jax.experimental import pallas as pl
from jax.experimental.pallas import tpu as pltpu


# ----------------------------------------------------------------------------
# Sizing helpers
# ----------------------------------------------------------------------------
def _round_up(x, m):
    return (x + m - 1) // m * m


def _vmem_limit_bytes():
    cap = 64 * 1024 * 1024
    try:
        cap = int(pltpu.get_tpu_info().vmem_capacity_bytes)
    except Exception:
        pass
    # 128 MiB chips (v5e/v6e) -> ~90 MiB budget (weight residency); v7x -> ~45 MiB.
    return max(32 * 1024 * 1024, min(int(cap * 0.7), 96 * 1024 * 1024))


_VMEM_LIMIT = _vmem_limit_bytes()
_TILE_BUDGET = int(_VMEM_LIMIT * 0.6)   # headroom for double-buffering slack
_TK_MAX = 2048                          # max reduction length in a single step


def _pick_tile(size, cap, align):
    """Largest multiple of `align` that is <= cap and divides `size`
    (`size` must already be a multiple of `align`)."""
    t = max(align, (min(size, cap) // align) * align)
    while size % t:
        t -= align
    return t


def _pick_tm(M, align):
    """M tile: large, but aim for >= 2 blocks on the parallel axis (megacore)."""
    cap = min(512, M)
    if M >= 2 * align:
        cap = min(cap, max(align, (M // 2) // align * align))
    return _pick_tile(M, cap, align)


# ----------------------------------------------------------------------------
# Pallas kernels
# ----------------------------------------------------------------------------
def _linear_bias_kernel(x_ref, w_ref, b_ref, o_ref):
    # Single reduction step: cast the activation tile to bf16 in-kernel (no
    # separate XLA cast pass), f32 MXU accumulate, fused bias epilogue.
    x = x_ref[...].astype(jnp.bfloat16)
    acc = jnp.dot(x, w_ref[...], preferred_element_type=jnp.float32)
    o_ref[...] = (acc + b_ref[...]).astype(o_ref.dtype)


def _linear_bias_acc_kernel(x_ref, w_ref, b_ref, o_ref, acc_ref):
    # Tiled reduction: f32 VMEM accumulator, epilogue on the last K step.
    k = pl.program_id(2)

    @pl.when(k == 0)
    def _():
        acc_ref[...] = jnp.zeros_like(acc_ref)

    x = x_ref[...].astype(jnp.bfloat16)
    acc_ref[...] += jnp.dot(x, w_ref[...], preferred_element_type=jnp.float32)

    @pl.when(k == pl.num_programs(2) - 1)
    def _():
        o_ref[...] = (acc_ref[...] + b_ref[...]).astype(o_ref.dtype)


def _dwconv_gelu_kernel(x_ref, w_ref, b_ref, o_ref):
    # x_ref: (H, W, C) bf16   (batch dim squeezed; NO spatial halo in HBM)
    # w_ref: (3, 3, C) f32    per-channel depthwise taps
    # b_ref: (1, C) f32
    # o_ref: (H, W, C) bf16
    # One output row at a time: acc lives in vregs, initialized with the bias.
    H, W, C = o_ref.shape
    w = w_ref[...]
    bias_row = jnp.broadcast_to(b_ref[...], (W, C)).astype(jnp.float32)
    zcol = jnp.zeros((1, C), jnp.float32)

    def shift_w(row, dw):
        # out[j] = row[j + dw], zero-filled outside [0, W)
        if dw == 0:
            return row
        if dw == 1:
            return jnp.concatenate([row[1:, :], zcol], axis=0)
        return jnp.concatenate([zcol, row[:W - 1, :]], axis=0)

    def row_body(i, carry):
        acc = bias_row
        for dh in (-1, 0, 1):
            r = i + dh
            ok = jnp.logical_and(r >= 0, r < H).astype(jnp.float32)
            rc = jnp.clip(r, 0, H - 1)
            row = x_ref[rc].astype(jnp.float32) * ok          # (W, C)
            for dw in (-1, 0, 1):
                acc = acc + shift_w(row, dw) * w[dh + 1, dw + 1][None, :]
        o_ref[i] = jax.nn.gelu(acc, approximate=True).astype(o_ref.dtype)
        return carry

    jax.lax.fori_loop(0, H, row_body, 0)


# ----------------------------------------------------------------------------
# Pallas wrappers
# ----------------------------------------------------------------------------
def linear_pallas(x, w_pad, b_pad, out_dtype):
    """Fused y = x @ w + b.

    x     : (M, K) f32 or bf16 (cast to bf16 inside the kernel)
    w_pad : (K, Np) bf16, Np a multiple of 128
    b_pad : (1, Np) f32
    returns (M, Np) out_dtype
    """
    M, K = x.shape
    Kw, Np = w_pad.shape
    assert Kw == K and Np % 128 == 0

    x_bytes = x.dtype.itemsize
    out_bytes = jnp.dtype(out_dtype).itemsize

    align = 16 if (x.dtype == jnp.bfloat16 or out_dtype == jnp.bfloat16) else 8
    tm = _pick_tm(M, align) if M % align == 0 else M   # full-dim fallback: no pad/slice

    # Output-lane tile: prefer the full Np panel (weights stay VMEM-resident
    # across all M tiles) as long as the estimated working set fits the budget.
    def fits(tn_):
        est = 2 * (tm * K * x_bytes + K * tn_ * 2 + tn_ * 4 + tm * tn_ * out_bytes)
        return est + tm * tn_ * 4 <= _TILE_BUDGET

    tn = Np
    while tn > 128 and not (Np % tn == 0 and fits(tn)):
        tn -= 128
    tn = max(tn, 128)

    gi, gj = M // tm, Np // tn

    if K <= _TK_MAX:
        # Single reduction step: no K grid axis, no scratch accumulator.
        # Grid order: the operand whose block index is constant along the inner
        # axis is fetched once; put the larger operand there.
        w_total = K * Np * 2
        x_total = M * K * x_bytes
        if gj == 1 or w_total <= x_total:
            grid = (gi, gj)                       # j inner: x fetched once per i
            xm = lambda i, j: (i, 0)
            wm = lambda i, j: (0, j)
            bm = lambda i, j: (0, j)
            om = lambda i, j: (i, j)
        else:
            grid = (gj, gi)                       # i inner: weights fetched once per j
            xm = lambda j, i: (i, 0)
            wm = lambda j, i: (0, j)
            bm = lambda j, i: (0, j)
            om = lambda j, i: (i, j)
        out = pl.pallas_call(
            _linear_bias_kernel,
            out_shape=jax.ShapeDtypeStruct((M, Np), out_dtype),
            grid_spec=pltpu.PrefetchScalarGridSpec(
                num_scalar_prefetch=0,
                grid=grid,
                in_specs=[
                    pl.BlockSpec((tm, K), xm),
                    pl.BlockSpec((K, tn), wm),
                    pl.BlockSpec((1, tn), bm),
                ],
                out_specs=pl.BlockSpec((tm, tn), om),
            ),
            compiler_params=pltpu.CompilerParams(
                dimension_semantics=("parallel", "parallel"),
                vmem_limit_bytes=_VMEM_LIMIT),
        )(x, w_pad, b_pad)
    else:
        # Large reduction: K tiled with an f32 VMEM accumulator.
        Kp = _round_up(K, 128)
        if Kp != K:
            x = jnp.pad(x, ((0, 0), (0, Kp - K)))
            w_pad = jnp.pad(w_pad, ((0, Kp - K), (0, 0)))
        tk = _pick_tile(Kp, 1024, 128)
        out = pl.pallas_call(
            _linear_bias_acc_kernel,
            out_shape=jax.ShapeDtypeStruct((M, Np), out_dtype),
            grid_spec=pltpu.PrefetchScalarGridSpec(
                num_scalar_prefetch=0,
                grid=(gi, gj, Kp // tk),
                in_specs=[
                    pl.BlockSpec((tm, tk), lambda i, j, k: (i, k)),
                    pl.BlockSpec((tk, tn), lambda i, j, k: (k, j)),
                    pl.BlockSpec((1, tn), lambda i, j, k: (0, j)),
                ],
                out_specs=pl.BlockSpec((tm, tn), lambda i, j, k: (i, j)),
                scratch_shapes=[pltpu.VMEM((tm, tn), jnp.float32)],
            ),
            compiler_params=pltpu.CompilerParams(
                dimension_semantics=("parallel", "parallel", "arbitrary"),
                vmem_limit_bytes=_VMEM_LIMIT),
        )(x, w_pad, b_pad)
    return out


def dwconv_gelu_pallas(x, w, b):
    """Depthwise 3x3 conv (stride 1, padding 1) + bias + GELU, fused.

    x : (B, H, W, C) bf16 (unpadded spatially; halo handled in-kernel)
    w : (3, 3, C) f32
    b : (1, C) f32
    returns (B, H, W, C) bf16
    """
    B, H, W, C = x.shape
    assert C % 128 == 0
    tc = _pick_tile(C, 256, 128)   # channel tile: VMEM-friendly, feeds both TCs
    return pl.pallas_call(
        _dwconv_gelu_kernel,
        out_shape=jax.ShapeDtypeStruct((B, H, W, C), jnp.bfloat16),
        grid_spec=pltpu.PrefetchScalarGridSpec(
            num_scalar_prefetch=0,
            grid=(B, C // tc),
            in_specs=[
                pl.BlockSpec((None, H, W, tc), lambda bb, cc: (bb, 0, 0, cc)),
                pl.BlockSpec((3, 3, tc), lambda bb, cc: (0, 0, cc)),
                pl.BlockSpec((1, tc), lambda bb, cc: (0, cc)),
            ],
            out_specs=pl.BlockSpec((None, H, W, tc), lambda bb, cc: (bb, 0, 0, cc)),
        ),
        compiler_params=pltpu.CompilerParams(
            dimension_semantics=("parallel", "parallel"),
            vmem_limit_bytes=_VMEM_LIMIT),
    )(x, w, b)


# ----------------------------------------------------------------------------
# Parameter handling (PyTorch layouts -> padded / transposed / bf16, done once)
# ----------------------------------------------------------------------------
def init_params(key, in_features, hidden_features, out_features):
    """PyTorch-layout parameters (nn.Linear: (out, in); depthwise Conv2d:
    (C, 1, 3, 3)). Values are arbitrary deterministic test data."""
    ks = jax.random.split(key, 6)
    return {
        "fc1_w": 0.05 * jax.random.normal(ks[0], (hidden_features, in_features), jnp.float32),
        "fc1_b": 0.05 * jax.random.normal(ks[1], (hidden_features,), jnp.float32),
        "dw_w": jnp.sqrt(2.0 / 9.0) * jax.random.normal(ks[2], (hidden_features, 1, 3, 3), jnp.float32),
        "dw_b": 0.05 * jax.random.normal(ks[3], (hidden_features,), jnp.float32),
        "fc2_w": 0.05 * jax.random.normal(ks[4], (out_features, hidden_features), jnp.float32),
        "fc2_b": 0.05 * jax.random.normal(ks[5], (out_features,), jnp.float32),
    }


def prepare_params(params):
    """Pad channel axes to multiples of 128 (lane-dense outputs), transpose to
    matmul layout, cast matmul weights to bf16. Done ONCE, outside the
    per-call path."""
    hidden, cin = params["fc1_w"].shape
    cout = params["fc2_w"].shape[0]
    hidden_p = _round_up(hidden, 128)
    cout_p = _round_up(cout, 128)

    w1 = jnp.pad(params["fc1_w"].T, ((0, 0), (0, hidden_p - hidden)))
    b1 = jnp.pad(params["fc1_b"], (0, hidden_p - hidden)).reshape(1, hidden_p)

    dw = jnp.transpose(params["dw_w"][:, 0, :, :], (1, 2, 0))          # (3,3,hidden)
    dw = jnp.pad(dw, ((0, 0), (0, 0), (0, hidden_p - hidden)))
    db = jnp.pad(params["dw_b"], (0, hidden_p - hidden)).reshape(1, hidden_p)

    w2 = jnp.pad(params["fc2_w"].T, ((0, hidden_p - hidden), (0, cout_p - cout)))
    b2 = jnp.pad(params["fc2_b"], (0, cout_p - cout)).reshape(1, cout_p)

    return {
        "hidden": hidden, "cout": cout,
        "fc1_w": w1.astype(jnp.bfloat16), "fc1_b": b1.astype(jnp.float32),
        "dw_w": dw.astype(jnp.float32), "dw_b": db.astype(jnp.float32),
        "fc2_w": w2.astype(jnp.bfloat16), "fc2_b": b2.astype(jnp.float32),
    }


# ----------------------------------------------------------------------------
# Mlp.forward
# ----------------------------------------------------------------------------
def mlp_forward_pallas(prep, x, H, W):
    """x: (B, N, Cin) with N == H*W.  Returns (B, N, out_features)."""
    B, N, Cin = x.shape
    assert N == H * W
    M = B * N
    hidden_p = prep["fc1_w"].shape[1]

    # fc1: f32 activations in (cast to bf16 inside the kernel), bf16 out.
    h = linear_pallas(x.reshape(M, Cin), prep["fc1_w"], prep["fc1_b"], jnp.bfloat16)

    # Depthwise 3x3 conv + bias + GELU (fused), bf16 in/out, halo in-kernel.
    y = dwconv_gelu_pallas(h.reshape(B, H, W, hidden_p), prep["dw_w"], prep["dw_b"])

    # fc2: bf16 in, f32 out.
    out = linear_pallas(y.reshape(M, hidden_p), prep["fc2_w"], prep["fc2_b"], jnp.float32)
    return out[:, :prep["cout"]].reshape(B, N, prep["cout"])


def mlp_forward_reference(params, x, H, W):
    """Pure-XLA f32 reference (validation only)."""
    B, N, Cin = x.shape
    hidden = params["fc1_w"].shape[0]
    cout = params["fc2_w"].shape[0]
    h = x.reshape(B * N, Cin) @ params["fc1_w"].T + params["fc1_b"]
    h = h.reshape(B, H, W, hidden)
    dw_hwio = jnp.transpose(params["dw_w"], (2, 3, 1, 0))                # (3,3,1,hidden)
    y = jax.lax.conv_general_dilated(
        h, dw_hwio, window_strides=(1, 1), padding=((1, 1), (1, 1)),
        dimension_numbers=("NHWC", "HWIO", "NHWC"),
        feature_group_count=hidden)
    y = y + params["dw_b"]
    y = jax.nn.gelu(y, approximate=True)
    out = y.reshape(B * N, hidden) @ params["fc2_w"].T + params["fc2_b"]
    return out.reshape(B, N, cout)


if __name__ == "__main__":
    key = jax.random.PRNGKey(0)
    kx, kp = jax.random.split(key)

    B, H, W = 2, 16, 16
    in_features, hidden_features, out_features = 32, 64, 32
    N = H * W

    x = jax.random.normal(kx, (B, N, in_features), jnp.float32)
    params = init_params(kp, in_features, hidden_features, out_features)
    prepared = prepare_params(params)

    out = mlp_forward_pallas(prepared, x, H, W)
    out = jax.block_until_ready(out)
    assert out.shape == (B, N, out_features), out.shape

    ref = jax.block_until_ready(mlp_forward_reference(params, x, H, W))
    max_err = float(jnp.max(jnp.abs(out - ref)))
    assert jnp.allclose(out, ref, rtol=2e-2, atol=2e-2), max_err

    print("KERNEL_OK")
</pallas_src>

<mosaic_0001>
module attributes {stable_mosaic.version = 11 : i64} {
  func.func @_linear_bias_kernel(%arg0: i32, %arg1: i32, %arg2: memref<256x32xf32, #tpu.memory_space<vmem>>, %arg3: memref<32x128xbf16, #tpu.memory_space<vmem>>, %arg4: memref<1x128xf32, #tpu.memory_space<vmem>>, %arg5: memref<256x128xbf16, #tpu.memory_space<vmem>>) attributes {dimension_semantics = [#tpu.dimension_semantics<parallel>, #tpu.dimension_semantics<parallel>], iteration_bounds = array<i64: 2, 1>, scalar_prefetch = 0 : i64, scratch_operands = 0 : i64, tpu.core_type = #tpu.core_type<tc>, window_params = [{transform_indices = @transform_0, window_bounds = array<i64: 256, 32>}, {transform_indices = @transform_1, window_bounds = array<i64: 32, 128>}, {transform_indices = @transform_2, window_bounds = array<i64: 1, 128>}, {transform_indices = @transform_3, window_bounds = array<i64: 256, 128>}]} {
    %c0 = arith.constant 0 : index
    %c0_0 = arith.constant 0 : index
    %0 = vector.load %arg2[%c0, %c0_0] : memref<256x32xf32, #tpu.memory_space<vmem>>, vector<256x32xf32>
    %1 = arith.truncf %0 : vector<256x32xf32> to vector<256x32xbf16>
    %c0_1 = arith.constant 0 : index
    %c0_2 = arith.constant 0 : index
    %2 = vector.load %arg3[%c0_1, %c0_2] : memref<32x128xbf16, #tpu.memory_space<vmem>>, vector<32x128xbf16>
    %cst = arith.constant dense<0.000000e+00> : vector<256x128xf32>
    %3 = tpu.matmul %1, %2, %cst {dimension_numbers = #tpu.dot_dimension_numbers<[1], [0], [0], [1], [0, 0, 1, 1], [], []>} : vector<256x32xbf16>, vector<32x128xbf16>, vector<256x128xf32> -> vector<256x128xf32>
    %c0_3 = arith.constant 0 : index
    %c0_4 = arith.constant 0 : index
    %4 = vector.load %arg4[%c0_3, %c0_4] : memref<1x128xf32, #tpu.memory_space<vmem>>, vector<1x128xf32>
    %5 = vector.broadcast %4 : vector<1x128xf32> to vector<256x128xf32>
    %6 = arith.addf %3, %5 : vector<256x128xf32>
    %7 = arith.truncf %6 : vector<256x128xf32> to vector<256x128xbf16>
    %c0_5 = arith.constant 0 : index
    %c0_6 = arith.constant 0 : index
    %8 = vector.load %arg5[%c0_5, %c0_6] : memref<256x128xbf16, #tpu.memory_space<vmem>>, vector<256x128xbf16>
    tpu.vector_store %arg5[%c0_5, %c0_6], %7 {strides = array<i32>} : memref<256x128xbf16, #tpu.memory_space<vmem>>, vector<256x128xbf16>,
    return
  }
  func.func @transform_0(%arg0: i32, %arg1: i32) -> (i32, i32) {
    %c0_i32 = arith.constant 0 : i32
    %c0_i32_0 = arith.constant 0 : i32
    return %arg0, %c0_i32 : i32, i32
  }
  func.func @transform_1(%arg0: i32, %arg1: i32) -> (i32, i32) {
    %c0_i32 = arith.constant 0 : i32
    %c0_i32_0 = arith.constant 0 : i32
    return %c0_i32, %arg1 : i32, i32
  }
  func.func @transform_2(%arg0: i32, %arg1: i32) -> (i32, i32) {
    %c0_i32 = arith.constant 0 : i32
    %c0_i32_0 = arith.constant 0 : i32
    return %c0_i32, %arg1 : i32, i32
  }
  func.func @transform_3(%arg0: i32, %arg1: i32) -> (i32, i32) {
    %c0_i32 = arith.constant 0 : i32
    return %arg0, %arg1 : i32, i32
  }
}

</mosaic_0001>

<llo_original>
// kernel: tpu_custom_call.1
$region0: #{tpu_custom_call.1}
  #allocation0 [shape = 'u32[]', space=smem, size = 0x4, offset = 0x4, fixed_abs, tag = 'smem constant byte address 0x4 - core index']
  #allocation1 [shape = 'u32[144,128]{1,0:T(1,128)}', space=vmem, size = 0x12000, scoped, tag = 'internal scratch']
  %s0 = inlined_call_operand.vmem [shape: f32[512,32], index: 0, kind: input, shape index: {}]
  %s1 = inlined_call_operand.vmem [shape: bf16[32,128], index: 1, kind: input, shape index: {}]
  %s2 = inlined_call_operand.vmem [shape: f32[1,128], index: 2, kind: input, shape index: {}]
  %s3 = inlined_call_operand.hbm [shape: bf16[512,128], index: 3, kind: output, shape index: {}]
  %s4 = sld [smem:[#allocation0]]
  $region45: #{tpu_custom_call.1} parent=0
    _
  %s6 = ssub.s32 1, %s4
  %s7 = scalar_select 0, %s6, %s4
  $region1: #{tpu_custom_call.1} parent=0
    #allocation2 [shape = 'u8[131072]{0}', space=vmem, size = 0x20000, scoped, tag = 'output window, operand 0']
    #allocation3 [shape = 's32[2]{0}', space=sflag, size = 0x8, scoped, tag = 'scoped memory for tpu_custom_call.1']
    %8 = vsyncpa [#allocation3], 0
    %s9 = scalar_lea.sflag [#allocation3], 1
    %10 = vsyncpa %s9, 0
    loop: start=0, step=1, limit=4
    $region2: #{tpu_custom_call.1} parent=1 // loop_pre_header
      _
    $region3: #{tpu_custom_call.1} parent=1 // loop_header
      %s12 = sphi 0, %s16
      %p13 = scmp.ge.s32.totalorder %s12, 4
      %s19 = sphi 0, %s31
      %s20 = sphi 0, %s27
      %s21 = sphi 0, %s19
      %s22 = sphi 0, %s20
      %s23 = sphi 0, %s21
      %s24 = sphi 0, %s22
      %s34 = sphi 0, %s36
      %s37 = sphi 0, %s34
      %s38 = sphi 0, %s37
      %s54 = sphi 0, %s38
      %s60 = sphi 0, %s62
      %s63 = sphi 0, %s60
      %s64 = sphi 0, %s63
      %s80 = sphi 0, %s64
      %s86 = sphi 0, %s88
      %s89 = sphi 0, %s86
      %s90 = sphi 0, %s89
      %s106 = sphi 0, %s90
      %s114 = sphi 0, %s116
      %s117 = sphi 0, %s114
      %s118 = sphi 0, %s117
      %s134 = sphi 0, %s118
    $region4: #{tpu_custom_call.1} parent=1 // loop_header_branch
      %15 = sbr.rel (%p13) target = $region8
    $region5: #{tpu_custom_call.1} parent=1 // loop_body
      %s17 = ssub.s32 %s12, 1
      %s18 = ssub.s32 %s12, 2
      %s25 = sadd.s32 1, %s20
      %p26 = scmp.ge.s32.totalorder %s25, 1
      %s27 = scalar_select %p26, 0, %s25
      %s28 = sadd.s32 1, %s19
      %s29 = scalar_select %p26, %s28, %s19
      %p30 = scmp.ge.s32.totalorder %s29, 2
      %s31 = scalar_select %p30, 0, %s29
      %s32 = ssub.s32 %s19, %s31
      %p33 = scmp.eq.s32.totalorder %s32, 0
      %s35 = sadd.s32 %s34, 1
      %s36 = scalar_select %p33, %s34, %s35
      %p39 = pneg %p33
      %p40 = scmp.eq.s32.totalorder %s12, 1
      %p41 = por %p39, %p40
      %p42 = scmp.ne.s32.totalorder %s34, %s37
      %p43 = scmp.eq.s32.totalorder %s12, 0
      %p44 = por %p42, %p43
      %p45 = scmp.ne.s32.totalorder %s34, %s37
      %p46 = scmp.eq.s32.totalorder %s17, 1
      %p47 = por %p45, %p46
      %p48 = scmp.ne.s32.totalorder %s37, %s38
      %p49 = scmp.eq.s32.totalorder %s17, 0
      %p50 = por %p48, %p49
      %p51 = scmp.ne.s32.totalorder %s37, %s38
      %p52 = scmp.eq.s32.totalorder %s18, 1
      %p53 = por %p51, %p52
      %p55 = scmp.ne.s32.totalorder %s38, %s54
      %p56 = scmp.eq.s32.totalorder %s18, 0
      %p57 = por %p55, %p56
      %s58 = ssub.s32 %s20, %s27
      %p59 = scmp.eq.s32.totalorder %s58, 0
      %s61 = sadd.s32 %s60, 1
      %s62 = scalar_select %p59, %s60, %s61
      %p65 = pneg %p59
      %p66 = scmp.eq.s32.totalorder %s12, 1
      %p67 = por %p65, %p66
      %p68 = scmp.ne.s32.totalorder %s60, %s63
      %p69 = scmp.eq.s32.totalorder %s12, 0
      %p70 = por %p68, %p69
      %p71 = scmp.ne.s32.totalorder %s60, %s63
      %p72 = scmp.eq.s32.totalorder %s17, 1
      %p73 = por %p71, %p72
      %p74 = scmp.ne.s32.totalorder %s63, %s64
      %p75 = scmp.eq.s32.totalorder %s17, 0
      %p76 = por %p74, %p75
      %p77 = scmp.ne.s32.totalorder %s63, %s64
      %p78 = scmp.eq.s32.totalorder %s18, 1
      %p79 = por %p77, %p78
      %p81 = scmp.ne.s32.totalorder %s64, %s80
      %p82 = scmp.eq.s32.totalorder %s18, 0
      %p83 = por %p81, %p82
      %s84 = ssub.s32 %s20, %s27
      %p85 = scmp.eq.s32.totalorder %s84, 0
      %s87 = sadd.s32 %s86, 1
      %s88 = scalar_select %p85, %s86, %s87
      %p91 = pneg %p85
      %p92 = scmp.eq.s32.totalorder %s12, 1
      %p93 = por %p91, %p92
      %p94 = scmp.ne.s32.totalorder %s86, %s89
      %p95 = scmp.eq.s32.totalorder %s12, 0
      %p96 = por %p94, %p95
      %p97 = scmp.ne.s32.totalorder %s86, %s89
      %p98 = scmp.eq.s32.totalorder %s17, 1
      %p99 = por %p97, %p98
      %p100 = scmp.ne.s32.totalorder %s89, %s90
      %p101 = scmp.eq.s32.totalorder %s17, 0
      %p102 = por %p100, %p101
      %p103 = scmp.ne.s32.totalorder %s89, %s90
      %p104 = scmp.eq.s32.totalorder %s18, 1
      %p105 = por %p103, %p104
      %p107 = scmp.ne.s32.totalorder %s90, %s106
      %p108 = scmp.eq.s32.totalorder %s18, 0
      %p109 = por %p107, %p108
      %s110 = ssub.s32 %s19, %s31
      %s111 = ssub.s32 %s20, %s27
      %s112 = sor.u32 %s110, %s111
      %p113 = scmp.eq.s32.totalorder %s112, 0
      %s115 = sadd.s32 %s114, 1
      %s116 = scalar_select %p113, %s114, %s115
      %p119 = pneg %p113
      %p120 = scmp.eq.s32.totalorder %s12, 1
      %p121 = por %p119, %p120
      %p122 = scmp.ne.s32.totalorder %s114, %s117
      %p123 = scmp.eq.s32.totalorder %s12, 0
      %p124 = por %p122, %p123
      %p125 = scmp.ne.s32.totalorder %s114, %s117
      %p126 = scmp.eq.s32.totalorder %s17, 1
      %p127 = por %p125, %p126
      %p128 = scmp.ne.s32.totalorder %s117, %s118
      %p129 = scmp.eq.s32.totalorder %s17, 0
      %p130 = por %p128, %p129
      %p131 = scmp.ne.s32.totalorder %s117, %s118
      %p132 = scmp.eq.s32.totalorder %s18, 1
      %p133 = por %p131, %p132
      %p135 = scmp.ne.s32.totalorder %s118, %s134
      %p136 = scmp.eq.s32.totalorder %s18, 0
      %p137 = por %p135, %p136
      %p138 = scmp.le.s32.totalorder 1, %s12
      %p139 = scmp.lt.s32.totalorder %s12, 3
      %p140 = pnand %p138, %p139
      %p141 = pneg %p140
      // Predicated region
      $region9: #{tpu_custom_call.1} parent=5 // pred_check
        _
      $region10: #{tpu_custom_call.1} parent=5 // pred_check_branch
        %143 = sbr.rel (%p140) target = $region12
      $region11: #{tpu_custom_call.1} parent=5 // pred_region
        %s144 = ssub.s32 %s12, 1
        // Predicated region
        $region13: #{tpu_custom_call.1} parent=11 // pred_check
          %p145 = pneg %p76
        $region14: #{tpu_custom_call.1} parent=11 // pred_check_branch
          %147 = sbr.rel (%p145) target = $region16
        $region15: #{tpu_custom_call.1} parent=11 // pred_region
          %p148 = scmp.lt.s32.totalorder %s22, 0
          %s149 = scalar_select %p148, %s22, 0
          %s150 = smul.addr %s149, 4
          %s151 = scalar_lea.vmem %s1, %s150
        $region16: #{tpu_custom_call.1} parent=11 // pred_fallthru
          _
        // Predicated region
        $region17: #{tpu_custom_call.1} parent=11 // pred_check
          %p152 = pneg %p102
        $region18: #{tpu_custom_call.1} parent=11 // pred_check_branch
          %154 = sbr.rel (%p152) target = $region20
        $region19: #{tpu_custom_call.1} parent=11 // pred_region
          %p155 = scmp.lt.s32.totalorder %s22, 0
          %s156 = scalar_select %p155, %s22, 0
          %s157 = scalar_lea.vmem %s2, %s156
        $region20: #{tpu_custom_call.1} parent=11 // pred_fallthru
          _
      $region12: #{tpu_custom_call.1} parent=5 // pred_fallthru
        _
      %p158 = scmp.lt.s32.totalorder %s12, 2
      // Predicated region
      $region21: #{tpu_custom_call.1} parent=5 // pred_check
        %p159 = pneg %p158
      $region22: #{tpu_custom_call.1} parent=5 // pred_check_branch
        %161 = sbr.rel (%p159) target = $region24
      $region23: #{tpu_custom_call.1} parent=5 // pred_region
        // Predicated region
        $region25: #{tpu_custom_call.1} parent=23 // pred_check
          %p162 = pneg %p44
        $region26: #{tpu_custom_call.1} parent=23 // pred_check_branch
          %164 = sbr.rel (%p162) target = $region28
        $region27: #{tpu_custom_call.1} parent=23 // pred_region
          %s165 = smul.u32 32, %s19
          %p166 = scmp.lt.s32.totalorder %s165, 63
          %s167 = scalar_select %p166, %s165, 63
          %s168 = smul.addr %s167, 8
          %s169 = scalar_lea.vmem %s0, %s168
          %s170 = smul.u32 32, %s19
        $region28: #{tpu_custom_call.1} parent=23 // pred_fallthru
          _
      $region24: #{tpu_custom_call.1} parent=5 // pred_fallthru
        _
      %p171 = scmp.le.s32.totalorder 1, %s12
      %p172 = scmp.lt.s32.totalorder %s12, 3
      %p173 = pnand %p171, %p172
      %p174 = pneg %p173
      // Predicated region
      $region29: #{tpu_custom_call.1} parent=5 // pred_check
        _
      $region30: #{tpu_custom_call.1} parent=5 // pred_check_branch
        %176 = sbr.rel (%p173) target = $region32
      $region31: #{tpu_custom_call.1} parent=5 // pred_region
        %s177 = ssub.s32 %s12, 1
        %s178 = smul.u32 32, %s21
        %p179 = scmp.lt.s32.totalorder %s178, 63
        %s180 = scalar_select %p179, %s178, 63
        %s181 = smul.addr %s180, 8
        %s182 = scalar_lea.vmem %s0, %s181
        %p183 = pneg %p50
        %p184 = pneg %p47
        %p185 = scmp.lt.s32.totalorder %s22, 0
        %s186 = scalar_select %p185, %s22, 0
        %s187 = smul.addr %s186, 4
        %s188 = scalar_lea.vmem %s1, %s187
        %p189 = pneg %p76
        %p190 = pneg %p73
        %p191 = scmp.lt.s32.totalorder %s22, 0
        %s192 = scalar_select %p191, %s22, 0
        %s193 = scalar_lea.vmem %s2, %s192
        %p194 = pneg %p102
        %p195 = pneg %p99
        %p196 = pneg %p130
        %p197 = pneg %p127
        %s198 = sand.u32 %s117, 1
        %s199 = scalar_lea.sflag [#allocation3], %s198
        %s200 = sand.u32 %s117, 1
        %s201 = smul.addr %s200, 128
        %s202 = scalar_lea.vmem [#allocation2], %s201
        %s203 = smul.u32 32, %s21
        %p204 = scmp.lt.s32.totalorder %s203, 63
        %s205 = scalar_select %p204, %s203, 63
        %s206 = smul.addr %s205, 8
        %s207 = scalar_lea.vmem %s0, %s206
        %s208 = smul.u32 32, %s21
        %p209 = scmp.lt.s32.totalorder %s22, 0
        %s210 = scalar_select %p209, %s22, 0
        %s211 = smul.addr %s210, 4
        %s212 = scalar_lea.vmem %s1, %s211
        %p213 = scmp.lt.s32.totalorder %s22, 0
        %s214 = scalar_select %p213, %s22, 0
        %s215 = scalar_lea.vmem %s2, %s214
        %s216 = smul.u32 32, %s21
        %v218 = vld [vmem:[%s207] sm:$0xff]
        %v219 = vld [vmem:[%s207 + $0x8] sm:$0xff]
        %v220 = vld [vmem:[%s207 + $0x10] sm:$0xff]
        %v221 = vld [vmem:[%s207 + $0x18] sm:$0xff]
        %v222 = vld [vmem:[%s207 + $0x20] sm:$0xff]
        %v223 = vld [vmem:[%s207 + $0x28] sm:$0xff]
        %v224 = vld [vmem:[%s207 + $0x30] sm:$0xff]
        %v225 = vld [vmem:[%s207 + $0x38] sm:$0xff]
        %v226 = vld [vmem:[%s207 + $0x40] sm:$0xff]
        %v227 = vld [vmem:[%s207 + $0x48] sm:$0xff]
        %v228 = vld [vmem:[%s207 + $0x50] sm:$0xff]
        %v229 = vld [vmem:[%s207 + $0x58] sm:$0xff]
        %v230 = vld [vmem:[%s207 + $0x60] sm:$0xff]
        %v231 = vld [vmem:[%s207 + $0x68] sm:$0xff]
        %v232 = vld [vmem:[%s207 + $0x70] sm:$0xff]
        %v233 = vld [vmem:[%s207 + $0x78] sm:$0xff]
        %v234 = vld [vmem:[%s207 + $0x80] sm:$0xff]
        %v235 = vld [vmem:[%s207 + $0x88] sm:$0xff]
        %v236 = vld [vmem:[%s207 + $0x90] sm:$0xff]
        %v237 = vld [vmem:[%s207 + $0x98] sm:$0xff]
        %v238 = vld [vmem:[%s207 + $0xa0] sm:$0xff]
        %v239 = vld [vmem:[%s207 + $0xa8] sm:$0xff]
        %v240 = vld [vmem:[%s207 + $0xb0] sm:$0xff]
        %v241 = vld [vmem:[%s207 + $0xb8] sm:$0xff]
        %v242 = vld [vmem:[%s207 + $0xc0] sm:$0xff]
        %v243 = vld [vmem:[%s207 + $0xc8] sm:$0xff]
        %v244 = vld [vmem:[%s207 + $0xd0] sm:$0xff]
        %v245 = vld [vmem:[%s207 + $0xd8] sm:$0xff]
        %v246 = vld [vmem:[%s207 + $0xe0] sm:$0xff]
        %v247 = vld [vmem:[%s207 + $0xe8] sm:$0xff]
        %v248 = vld [vmem:[%s207 + $0xf0] sm:$0xff]
        %v249 = vld [vmem:[%s207 + $0xf8] sm:$0xff]
        %v250 = vpack.c.bf16 %v219, %v218
        %v251 = vpack.c.bf16 %v221, %v220
        %v252 = vpack.c.bf16 %v223, %v222
        %v253 = vpack.c.bf16 %v225, %v224
        %v254 = vpack.c.bf16 %v227, %v226
        %v255 = vpack.c.bf16 %v229, %v228
        %v256 = vpack.c.bf16 %v231, %v230
        %v257 = vpack.c.bf16 %v233, %v232
        %v258 = vpack.c.bf16 %v235, %v234
        %v259 = vpack.c.bf16 %v237, %v236
        %v260 = vpack.c.bf16 %v239, %v238
        %v261 = vpack.c.bf16 %v241, %v240
        %v262 = vpack.c.bf16 %v243, %v242
        %v263 = vpack.c.bf16 %v245, %v244
        %v264 = vpack.c.bf16 %v247, %v246
        %v265 = vpack.c.bf16 %v249, %v248
        %v266 = vld [vmem:[%s212] sm:$0xf]
        %v267 = vld [vmem:[%s212 + $0x4] sm:$0xf]
        %v268 = vld [vmem:[%s212 + $0x8] sm:$0xf]
        %v269 = vld [vmem:[%s212 + $0xc] sm:$0xf]
        %v270 = vld [vmem:[%s215] sm:$0x1]
        %v272 = vlaneseq
        %v273 = vshrl.u32 %v272, 7
        %v274 = vsub.s32 0, %v273
        %v275 = vrot.slane %v270, %v274
        %v281 = vunpack.c.l.b16 %v266
        %v282 = vunpack.c.l.b16 %v267
        %v283 = vunpack.c.l.b16 %v268
        %v284 = vunpack.c.l.b16 %v269
        %v285 = vpack.c.b16 %v282, %v281
        %v286 = vpack.c.b16 %v284, %v283
        %vm289 = vcmask 261120
        %v291 = vsel %vm289, %v250, 0
        %v294 = vsel %vm289, %v251, 0
        %v297 = vsel %vm289, %v252, 0
        %v300 = vsel %vm289, %v253, 0
        %v303 = vsel %vm289, %v254, 0
        %v306 = vsel %vm289, %v255, 0
        %v309 = vsel %vm289, %v256, 0
        %v312 = vsel %vm289, %v257, 0
        %v315 = vsel %vm289, %v258, 0
        %v318 = vsel %vm289, %v259, 0
        %v321 = vsel %vm289, %v260, 0
        %v324 = vsel %vm289, %v261, 0
        %v327 = vsel %vm289, %v262, 0
        %v330 = vsel %vm289, %v263, 0
        %v333 = vsel %vm289, %v264, 0
        %v336 = vsel %vm289, %v265, 0
        %338 = vmatprep.subr.bf16.mxu0 0
        %339 = vmatpush1.bf16.msra.mxu0 0
        %340 = vmatprep.subr.bf16.mxu0 0
        %341 = vmatpush1.bf16.msra.mxu0 0
        %342 = vmatprep.subr.bf16.mxu0 0
        %343 = vmatpush1.bf16.msra.mxu0 0
        %344 = vmatprep.subr.bf16.mxu0 0
        %345 = vmatpush1.bf16.msra.mxu0 0
        %346 = vmatprep.subr.bf16.mxu0 0
        %347 = vmatpush1.bf16.msra.mxu0 0
        %348 = vmatprep.subr.bf16.mxu0 0
        %349 = vmatpush1.bf16.msra.mxu0 0
        %350 = vmatprep.subr.bf16.mxu0 0
        %351 = vmatpush1.bf16.msra.mxu0 %v286
        %352 = vmatprep.subr.bf16.mxu0 0
        %353 = vmatpush1.bf16.msra.mxu0 %v285
        %354 = vmatprep.subr.bf16.mxu0 0
        %355 = vmatpush2.bf16.msra.mxu0 0
        %356 = vmatprep.subr.bf16.mxu0 0
        %357 = vmatpush2.bf16.msra.mxu0 0
        %358 = vmatprep.subr.bf16.mxu0 0
        %359 = vmatpush2.bf16.msra.mxu0 0
        %360 = vmatprep.subr.bf16.mxu0 0
        %361 = vmatpush2.bf16.msra.mxu0 0
        %362 = vmatprep.subr.bf16.mxu0 0
        %363 = vmatpush2.bf16.msra.mxu0 0
        %364 = vmatprep.subr.bf16.mxu0 0
        %365 = vmatpush2.bf16.msra.mxu0 0
        %366 = vmatprep.subr.bf16.mxu0 0
        %367 = vmatpush2.bf16.msra.mxu0 0
        %368 = vmatprep.subr.bf16.mxu0 0
        %369 = vmatpush2.bf16.msra.mxu0 0
        %370 = vmatprep.mubr.bf16.mxu0 0
        %371 = vmatmul.mubr.bf16.gmra.mxu0 %v291
        %v372 = vpop.f32.mrf.mxu0
        %v373 = vadd.f32 %v275, %v372
        %v374 = vpop.f32.mrf.mxu0
        %v375 = vpop.f32.mrf.mxu0
        %v376 = vadd.f32 %v275, %v375
        %v377 = vpop.f32.mrf.mxu0
        %378 = vmatprep.mubr.bf16.mxu0 0
        %379 = vmatmul.mubr.bf16.gmra.mxu0 %v294
        %v380 = vpop.f32.mrf.mxu0
        %v381 = vadd.f32 %v275, %v380
        %v382 = vpop.f32.mrf.mxu0
        %v383 = vpop.f32.mrf.mxu0
        %v384 = vadd.f32 %v275, %v383
        %v385 = vpop.f32.mrf.mxu0
        %386 = vmatprep.mubr.bf16.mxu0 0
        %387 = vmatmul.mubr.bf16.gmra.mxu0 %v297
        %v388 = vpop.f32.mrf.mxu0
        %v389 = vadd.f32 %v275, %v388
        %v390 = vpop.f32.mrf.mxu0
        %v391 = vpop.f32.mrf.mxu0
        %v392 = vadd.f32 %v275, %v391
        %v393 = vpop.f32.mrf.mxu0
        %394 = vmatprep.mubr.bf16.mxu0 0
        %395 = vmatmul.mubr.bf16.gmra.mxu0 %v300
        %v396 = vpop.f32.mrf.mxu0
        %v397 = vadd.f32 %v275, %v396
        %v398 = vpop.f32.mrf.mxu0
        %v399 = vpop.f32.mrf.mxu0
        %v400 = vadd.f32 %v275, %v399
        %v401 = vpop.f32.mrf.mxu0
        %402 = vmatprep.mubr.bf16.mxu0 0
        %403 = vmatmul.mubr.bf16.gmra.mxu0 %v303
        %v404 = vpop.f32.mrf.mxu0
        %v405 = vadd.f32 %v275, %v404
        %v406 = vpop.f32.mrf.mxu0
        %v407 = vpop.f32.mrf.mxu0
        %v408 = vadd.f32 %v275, %v407
        %v409 = vpop.f32.mrf.mxu0
        %410 = vmatprep.mubr.bf16.mxu0 0
        %411 = vmatmul.mubr.bf16.gmra.mxu0 %v306
        %v412 = vpop.f32.mrf.mxu0
        %v413 = vadd.f32 %v275, %v412
        %v414 = vpop.f32.mrf.mxu0
        %v415 = vpop.f32.mrf.mxu0
        %v416 = vadd.f32 %v275, %v415
        %v417 = vpop.f32.mrf.mxu0
        %418 = vmatprep.mubr.bf16.mxu0 0
        %419 = vmatmul.mubr.bf16.gmra.mxu0 %v309
        %v420 = vpop.f32.mrf.mxu0
        %v421 = vadd.f32 %v275, %v420
        %v422 = vpop.f32.mrf.mxu0
        %v423 = vpop.f32.mrf.mxu0
        %v424 = vadd.f32 %v275, %v423
        %v425 = vpop.f32.mrf.mxu0
        %426 = vmatprep.mubr.bf16.mxu0 0
        %427 = vmatmul.mubr.bf16.gmra.mxu0 %v312
        %v428 = vpop.f32.mrf.mxu0
        %v429 = vadd.f32 %v275, %v428
        %v430 = vpop.f32.mrf.mxu0
        %v431 = vpop.f32.mrf.mxu0
        %v432 = vadd.f32 %v275, %v431
        %v433 = vpop.f32.mrf.mxu0
        %434 = vmatprep.mubr.bf16.mxu0 0
        %435 = vmatmul.mubr.bf16.gmra.mxu0 %v315
        %v436 = vpop.f32.mrf.mxu0
        %v437 = vadd.f32 %v275, %v436
        %v438 = vpop.f32.mrf.mxu0
        %v439 = vpop.f32.mrf.mxu0
        %v440 = vadd.f32 %v275, %v439
        %v441 = vpop.f32.mrf.mxu0
        %442 = vmatprep.mubr.bf16.mxu0 0
        %443 = vmatmul.mubr.bf16.gmra.mxu0 %v318
        %v444 = vpop.f32.mrf.mxu0
        %v445 = vadd.f32 %v275, %v444
        %v446 = vpop.f32.mrf.mxu0
        %v447 = vpop.f32.mrf.mxu0
        %v448 = vadd.f32 %v275, %v447
        %v449 = vpop.f32.mrf.mxu0
        %450 = vmatprep.mubr.bf16.mxu0 0
        %451 = vmatmul.mubr.bf16.gmra.mxu0 %v321
        %v452 = vpop.f32.mrf.mxu0
        %v453 = vadd.f32 %v275, %v452
        %v454 = vpop.f32.mrf.mxu0
        %v455 = vpop.f32.mrf.mxu0
        %v456 = vadd.f32 %v275, %v455
        %v457 = vpop.f32.mrf.mxu0
        %458 = vmatprep.mubr.bf16.mxu0 0
        %459 = vmatmul.mubr.bf16.gmra.mxu0 %v324
        %v460 = vpop.f32.mrf.mxu0
        %v461 = vadd.f32 %v275, %v460
        %v462 = vpop.f32.mrf.mxu0
        %v463 = vpop.f32.mrf.mxu0
        %v464 = vadd.f32 %v275, %v463
        %v465 = vpop.f32.mrf.mxu0
        %466 = vmatprep.mubr.bf16.mxu0 0
        %467 = vmatmul.mubr.bf16.gmra.mxu0 %v327
        %v468 = vpop.f32.mrf.mxu0
        %v469 = vadd.f32 %v275, %v468
        %v470 = vpop.f32.mrf.mxu0
        %v471 = vpop.f32.mrf.mxu0
        %v472 = vadd.f32 %v275, %v471
        %v473 = vpop.f32.mrf.mxu0
        %474 = vmatprep.mubr.bf16.mxu0 0
        %475 = vmatmul.mubr.bf16.gmra.mxu0 %v330
        %v476 = vpop.f32.mrf.mxu0
        %v477 = vadd.f32 %v275, %v476
        %v478 = vpop.f32.mrf.mxu0
        %v479 = vpop.f32.mrf.mxu0
        %v480 = vadd.f32 %v275, %v479
        %v481 = vpop.f32.mrf.mxu0
        %482 = vmatprep.mubr.bf16.mxu0 0
        %483 = vmatmul.mubr.bf16.gmra.mxu0 %v333
        %v484 = vpop.f32.mrf.mxu0
        %v485 = vadd.f32 %v275, %v484
        %v486 = vpop.f32.mrf.mxu0
        %v487 = vpop.f32.mrf.mxu0
        %v488 = vadd.f32 %v275, %v487
        %v489 = vpop.f32.mrf.mxu0
        %490 = vmatprep.mubr.bf16.mxu0 0
        %491 = vmatmul.mubr.bf16.gmra.mxu0 %v336
        %v492 = vpop.f32.mrf.mxu0
        %v493 = vadd.f32 %v275, %v492
        %v494 = vpop.f32.mrf.mxu0
        %v495 = vpop.f32.mrf.mxu0
        %v496 = vadd.f32 %v275, %v495
        %v497 = vpop.f32.mrf.mxu0
        %498 = vdwg.mxu0
        %v499 = vpack.c.bf16 %v376, %v373
        %v500 = vpack.c.bf16 %v384, %v381
        %v501 = vpack.c.bf16 %v392, %v389
        %v502 = vpack.c.bf16 %v400, %v397
        %v503 = vpack.c.bf16 %v408, %v405
        %v504 = vpack.c.bf16 %v416, %v413
        %v505 = vpack.c.bf16 %v424, %v421
        %v506 = vpack.c.bf16 %v432, %v429
        %v507 = vpack.c.bf16 %v440, %v437
        %v508 = vpack.c.bf16 %v448, %v445
        %v509 = vpack.c.bf16 %v456, %v453
        %v510 = vpack.c.bf16 %v464, %v461
        %v511 = vpack.c.bf16 %v472, %v469
        %v512 = vpack.c.bf16 %v480, %v477
        %v513 = vpack.c.bf16 %v488, %v485
        %v514 = vpack.c.bf16 %v496, %v493
        %v531 = vunpack.c.l.b16 %v499
        %v532 = vunpack.c.h.b16 %v499
        %v533 = vunpack.c.l.b16 %v500
        %v534 = vunpack.c.h.b16 %v500
        %v535 = vunpack.c.l.b16 %v501
        %v536 = vunpack.c.h.b16 %v501
        %v537 = vunpack.c.l.b16 %v502
        %v538 = vunpack.c.h.b16 %v502
        %v539 = vunpack.c.l.b16 %v503
        %v540 = vunpack.c.h.b16 %v503
        %v541 = vunpack.c.l.b16 %v504
        %v542 = vunpack.c.h.b16 %v504
        %v543 = vunpack.c.l.b16 %v505
        %v544 = vunpack.c.h.b16 %v505
        %v545 = vunpack.c.l.b16 %v506
        %v546 = vunpack.c.h.b16 %v506
        %v547 = vunpack.c.l.b16 %v507
        %v548 = vunpack.c.h.b16 %v507
        %v549 = vunpack.c.l.b16 %v508
        %v550 = vunpack.c.h.b16 %v508
        %v551 = vunpack.c.l.b16 %v509
        %v552 = vunpack.c.h.b16 %v509
        %v553 = vunpack.c.l.b16 %v510
        %v554 = vunpack.c.h.b16 %v510
        %v555 = vunpack.c.l.b16 %v511
        %v556 = vunpack.c.h.b16 %v511
        %v557 = vunpack.c.l.b16 %v512
        %v558 = vunpack.c.h.b16 %v512
        %v559 = vunpack.c.l.b16 %v513
        %v560 = vunpack.c.h.b16 %v513
        %v561 = vunpack.c.l.b16 %v514
        %v562 = vunpack.c.h.b16 %v514
        %v563 = vpack.c.b16 %v531, %v531
        %v564 = vpack.c.b16 %v532, %v532
        %v565 = vpack.c.b16 %v533, %v533
        %v566 = vpack.c.b16 %v534, %v534
        %v567 = vpack.c.b16 %v535, %v535
        %v568 = vpack.c.b16 %v536, %v536
        %v569 = vpack.c.b16 %v537, %v537
        %v570 = vpack.c.b16 %v538, %v538
        %v571 = vpack.c.b16 %v539, %v539
        %v572 = vpack.c.b16 %v540, %v540
        %v573 = vpack.c.b16 %v541, %v541
        %v574 = vpack.c.b16 %v542, %v542
        %v575 = vpack.c.b16 %v543, %v543
        %v576 = vpack.c.b16 %v544, %v544
        %v577 = vpack.c.b16 %v545, %v545
        %v578 = vpack.c.b16 %v546, %v546
        %v579 = vpack.c.b16 %v547, %v547
        %v580 = vpack.c.b16 %v548, %v548
        %v581 = vpack.c.b16 %v549, %v549
        %v582 = vpack.c.b16 %v550, %v550
        %v583 = vpack.c.b16 %v551, %v551
        %v584 = vpack.c.b16 %v552, %v552
        %v585 = vpack.c.b16 %v553, %v553
        %v586 = vpack.c.b16 %v554, %v554
        %v587 = vpack.c.b16 %v555, %v555
        %v588 = vpack.c.b16 %v556, %v556
        %v589 = vpack.c.b16 %v557, %v557
        %v590 = vpack.c.b16 %v558, %v558
        %v591 = vpack.c.b16 %v559, %v559
        %v592 = vpack.c.b16 %v560, %v560
        %v593 = vpack.c.b16 %v561, %v561
        %v594 = vpack.c.b16 %v562, %v562
        %627 = vst [vmem:[%s202] sm:$0xf] %v563
        %628 = vst [vmem:[%s202 + $0x4] sm:$0xf] %v564
        %629 = vst [vmem:[%s202 + $0x8] sm:$0xf] %v565
        %630 = vst [vmem:[%s202 + $0xc] sm:$0xf] %v566
        %631 = vst [vmem:[%s202 + $0x10] sm:$0xf] %v567
        %632 = vst [vmem:[%s202 + $0x14] sm:$0xf] %v568
        %633 = vst [vmem:[%s202 + $0x18] sm:$0xf] %v569
        %634 = vst [vmem:[%s202 + $0x1c] sm:$0xf] %v570
        %635 = vst [vmem:[%s202 + $0x20] sm:$0xf] %v571
        %636 = vst [vmem:[%s202 + $0x24] sm:$0xf] %v572
        %637 = vst [vmem:[%s202 + $0x28] sm:$0xf] %v573
        %638 = vst [vmem:[%s202 + $0x2c] sm:$0xf] %v574
        %639 = vst [vmem:[%s202 + $0x30] sm:$0xf] %v575
        %640 = vst [vmem:[%s202 + $0x34] sm:$0xf] %v576
        %641 = vst [vmem:[%s202 + $0x38] sm:$0xf] %v577
        %642 = vst [vmem:[%s202 + $0x3c] sm:$0xf] %v578
        %643 = vst [vmem:[%s202 + $0x40] sm:$0xf] %v579
        %644 = vst [vmem:[%s202 + $0x44] sm:$0xf] %v580
        %645 = vst [vmem:[%s202 + $0x48] sm:$0xf] %v581
        %646 = vst [vmem:[%s202 + $0x4c] sm:$0xf] %v582
        %647 = vst [vmem:[%s202 + $0x50] sm:$0xf] %v583
        %648 = vst [vmem:[%s202 + $0x54] sm:$0xf] %v584
        %649 = vst [vmem:[%s202 + $0x58] sm:$0xf] %v585
        %650 = vst [vmem:[%s202 + $0x5c] sm:$0xf] %v586
        %651 = vst [vmem:[%s202 + $0x60] sm:$0xf] %v587
        %652 = vst [vmem:[%s202 + $0x64] sm:$0xf] %v588
        %653 = vst [vmem:[%s202 + $0x68] sm:$0xf] %v589
        %654 = vst [vmem:[%s202 + $0x6c] sm:$0xf] %v590
        %655 = vst [vmem:[%s202 + $0x70] sm:$0xf] %v591
        %656 = vst [vmem:[%s202 + $0x74] sm:$0xf] %v592
        %657 = vst [vmem:[%s202 + $0x78] sm:$0xf] %v593
        %658 = vst [vmem:[%s202 + $0x7c] sm:$0xf] %v594
        %s659 = sand.u32 %s117, 1
        %s660 = scalar_lea.sflag [#allocation3], %s659
        %s661 = sand.u32 %s117, 1
        %s662 = smul.addr %s661, 128
        %s663 = scalar_lea.vmem [#allocation2], %s662
        // Predicated region
        $region33: #{tpu_custom_call.1} parent=31 // pred_check
          %p664 = pneg %p127
        $region34: #{tpu_custom_call.1} parent=31 // pred_check_branch
          %666 = sbr.rel (%p664) target = $region36
        $region35: #{tpu_custom_call.1} parent=31 // pred_region
          %s667 = smul.u32 32, %s21
          %s669 = ssub.s32 2048, 2048
          %670 = vsyncadd %s660, %s669
          %s671 = sadd.s32 %s22, %s667
          %s672 = smul.addr %s671, 64
          %s673 = scalar_lea.hbm %s3, %s672
          %s674 = sshll.u32 %s663, 4
          %s675 = int_to_ptr.vmem [resolvable:$true] %s674
          %680 = dma.vmem_to_hbm [thread:$0]  %s675, 2048, %s673, %s660, 64, 64, 4
        $region36: #{tpu_custom_call.1} parent=31 // pred_fallthru
          _
      $region32: #{tpu_custom_call.1} parent=5 // pred_fallthru
        _
      %p681 = scmp.le.s32.totalorder 2, %s12
      // Predicated region
      $region37: #{tpu_custom_call.1} parent=5 // pred_check
        %p682 = pneg %p681
      $region38: #{tpu_custom_call.1} parent=5 // pred_check_branch
        %684 = sbr.rel (%p682) target = $region40
      $region39: #{tpu_custom_call.1} parent=5 // pred_region
        %s685 = ssub.s32 %s12, 2
        // Predicated region
        $region41: #{tpu_custom_call.1} parent=39 // pred_check
          %p686 = pneg %p133
        $region42: #{tpu_custom_call.1} parent=39 // pred_check_branch
          %688 = sbr.rel (%p686) target = $region44
        $region43: #{tpu_custom_call.1} parent=39 // pred_region
          %s689 = sand.u32 %s118, 1
          %s690 = scalar_lea.sflag [#allocation3], %s689
          %s691 = sand.u32 %s118, 1
          %s692 = smul.addr %s691, 128
          %s693 = scalar_lea.vmem [#allocation2], %s692
          %694 = dma.done %s690, 2048
        $region44: #{tpu_custom_call.1} parent=39 // pred_fallthru
          _
      $region40: #{tpu_custom_call.1} parent=5 // pred_fallthru
        _
    $region6: #{tpu_custom_call.1} parent=1 // loop_footer
      %s16 = sadd.s32 1, %s12
    $region7: #{tpu_custom_call.1} parent=1 // loop_footer_branch
      %11 = sbr.rel target = $region3
    $region8: #{tpu_custom_call.1} parent=1 // loop_exit
      _
    %695 = vsyncpa [#allocation3], 1
    %s696 = scalar_lea.sflag [#allocation3], 1
    %697 = vsyncpa %s696, 1

</llo_original>
